<compile_context>
chip_gen: v6e
topology: v6e:2x2x1
jax: 0.10.0
libtpu: 0.0.40
codegen_flags: <defaults>
</compile_context>

<pallas_src>
import jax
import jax.numpy as jnp
from jax.experimental import pallas as pl
from jax.experimental.pallas import tpu as pltpu


def eca_kernel(x_ref, w_ref, o_ref):
    # x_ref: (1, C, HW) slab for one batch element (native dtype)
    # w_ref: (1, C)     center-tap conv weight (f32)
    x = x_ref[...]                                   # no full-slab upcast
    hw = x.shape[-1]

    # AdaptiveAvgPool2d(1): spatial mean with f32 accumulation -> (1, C)
    avg = jnp.sum(x, axis=2, dtype=jnp.float32) * (1.0 / hw)

    # Conv2d(C, 1, k, padding=(k-1)//2, bias=False) on a 1x1 spatial input:
    # zero padding contributes nothing -> channel-weighted sum (center tap).
    w = w_ref[...].astype(jnp.float32)               # (1, C)
    conv_out = jnp.sum(avg * w)                      # scalar per batch element

    scale = jax.nn.sigmoid(conv_out).astype(x.dtype)
    o_ref[...] = (x * scale).astype(o_ref.dtype)


def eca_attention(x, weight):
    """x: (B, C, H, W); weight: (1, C, K, K) Conv2d weight (bias=False)."""
    B, C, H, W = x.shape
    HW = H * W
    K = weight.shape[-1]
    kc = (K - 1) // 2

    # Precompute the center tap outside the kernel: lane-dense (1, C).
    w_center = weight[0:1, :, kc, kc].astype(jnp.float32)

    # Free view for contiguous NCHW: flatten spatial dims into the lane axis.
    x_flat = x.reshape(B, C, HW)

    out_flat = pl.pallas_call(
        eca_kernel,
        out_shape=jax.ShapeDtypeStruct((B, C, HW), x.dtype),
        grid=(B,),
        in_specs=[
            pl.BlockSpec((1, C, HW), lambda b: (b, 0, 0)),
            pl.BlockSpec((1, C), lambda b: (0, 0)),
        ],
        out_specs=pl.BlockSpec((1, C, HW), lambda b: (b, 0, 0)),
        compiler_params=pltpu.CompilerParams(
            dimension_semantics=("parallel",),
            # Raise above the default scoped limit (16 MiB v5e / 32 MiB v6e,
            # v7x) so the double-buffered per-batch slab keeps full pipeline
            # depth; 64 MiB stays within physical VMEM on all generations.
            vmem_limit_bytes=64 * 1024 * 1024,
        ),
    )(x_flat, w_center)

    return out_flat.reshape(B, C, H, W)


def eca_attention_ref(x, weight):
    """Plain-JAX reference reproducing the PyTorch forward exactly."""
    avg = jnp.mean(x, axis=(2, 3), keepdims=True)             # (B,C,1,1)
    kc = (weight.shape[-1] - 1) // 2
    w_center = weight[0, :, kc, kc]                            # (C,)
    conv_out = jnp.einsum("bc,c->b", avg[:, :, 0, 0], w_center)
    scale = jax.nn.sigmoid(conv_out)[:, None, None, None]      # (B,1,1,1)
    return x * scale


if __name__ == "__main__":
    B, C, H, W = 2, 4, 16, 16
    kernel_size = 3

    key = jax.random.PRNGKey(0)
    kx, kw = jax.random.split(key)
    x = jax.random.normal(kx, (B, C, H, W), dtype=jnp.float32)
    # Deterministic synthetic Conv2d weight: (out_channels=1, C, k, k)
    weight = 0.1 * jax.random.normal(kw, (1, C, kernel_size, kernel_size),
                                     dtype=jnp.float32)

    out = eca_attention(x, weight)
    out = jax.block_until_ready(out)

    ref = eca_attention_ref(x, weight)
    assert out.shape == (B, C, H, W)
    assert jnp.allclose(out, ref, atol=1e-5, rtol=1e-5), "mismatch vs reference"

    print("KERNEL_OK")
</pallas_src>

<mosaic_0001>
module attributes {stable_mosaic.version = 11 : i64} {
  func.func @eca_kernel(%arg0: i32, %arg1: memref<1x4x256xf32, #tpu.memory_space<vmem>>, %arg2: memref<1x4xf32, #tpu.memory_space<vmem>>, %arg3: memref<1x4x256xf32, #tpu.memory_space<vmem>>) attributes {dimension_semantics = [#tpu.dimension_semantics<parallel>], iteration_bounds = array<i64: 2>, scalar_prefetch = 0 : i64, scratch_operands = 0 : i64, tpu.core_type = #tpu.core_type<tc>, window_params = [{transform_indices = @transform_0, window_bounds = array<i64: 1, 4, 256>}, {pipeline_mode = #tpu.pipeline_mode<synchronous>, transform_indices = @transform_1, window_bounds = array<i64: 1, 4>}, {transform_indices = @transform_2, window_bounds = array<i64: 1, 4, 256>}]} {
    %c0 = arith.constant 0 : index
    %c0_0 = arith.constant 0 : index
    %c0_1 = arith.constant 0 : index
    %0 = vector.load %arg1[%c0, %c0_0, %c0_1] : memref<1x4x256xf32, #tpu.memory_space<vmem>>, vector<1x4x256xf32>
    %cst = arith.constant dense<0.000000e+00> : vector<1x4xf32>
    %1 = vector.multi_reduction <add>, %0, %cst [2] : vector<1x4x256xf32> to vector<1x4xf32>
    %cst_2 = arith.constant 3.906250e-03 : f32
    %2 = vector.broadcast %cst_2 : f32 to vector<1x4xf32>
    %3 = arith.mulf %1, %2 : vector<1x4xf32>
    %c0_3 = arith.constant 0 : index
    %c0_4 = arith.constant 0 : index
    %4 = vector.load %arg2[%c0_3, %c0_4] : memref<1x4xf32, #tpu.memory_space<vmem>>, vector<1x4xf32>
    %5 = arith.mulf %3, %4 : vector<1x4xf32>
    %6 = vector.shape_cast %5 : vector<1x4xf32> to vector<1x1x4xf32>
    %cst_5 = arith.constant dense<0.000000e+00> : vector<1xf32>
    %7 = vector.multi_reduction <add>, %6, %cst_5 [1, 2] : vector<1x1x4xf32> to vector<1xf32>
    %8 = vector.shape_cast %7 : vector<1xf32> to vector<1x1x1xf32>
    %9 = vector.extract %8[0, 0, 0] : f32 from vector<1x1x1xf32>
    %10 = arith.negf %9 : f32
    %11 = math.exp %10 : f32
    %cst_6 = arith.constant 1.000000e+00 : f32
    %12 = arith.addf %cst_6, %11 : f32
    %13 = arith.divf %cst_6, %12 : f32
    %14 = vector.broadcast %13 : f32 to vector<1x4x256xf32>
    %15 = arith.mulf %0, %14 : vector<1x4x256xf32>
    %c0_7 = arith.constant 0 : index
    %c0_8 = arith.constant 0 : index
    %c0_9 = arith.constant 0 : index
    %16 = vector.load %arg3[%c0_7, %c0_8, %c0_9] : memref<1x4x256xf32, #tpu.memory_space<vmem>>, vector<1x4x256xf32>
    tpu.vector_store %arg3[%c0_7, %c0_8, %c0_9], %15 {strides = array<i32>} : memref<1x4x256xf32, #tpu.memory_space<vmem>>, vector<1x4x256xf32>,
    return
  }
  func.func @transform_0(%arg0: i32) -> (i32, i32, i32) {
    %c0_i32 = arith.constant 0 : i32
    %c0_i32_0 = arith.constant 0 : i32
    %c0_i32_1 = arith.constant 0 : i32
    return %arg0, %c0_i32, %c0_i32_0 : i32, i32, i32
  }
  func.func @transform_1(%arg0: i32) -> (i32, i32) {
    %c0_i32 = arith.constant 0 : i32
    %c0_i32_0 = arith.constant 0 : i32
    %c0_i32_1 = arith.constant 0 : i32
    return %c0_i32, %c0_i32_0 : i32, i32
  }
  func.func @transform_2(%arg0: i32) -> (i32, i32, i32) {
    %c0_i32 = arith.constant 0 : i32
    %c0_i32_0 = arith.constant 0 : i32
    %c0_i32_1 = arith.constant 0 : i32
    return %arg0, %c0_i32, %c0_i32_0 : i32, i32, i32
  }
}

</mosaic_0001>

<llo_original>
// kernel: tpu_custom_call.1
$region0: #{tpu_custom_call.1}
  #allocation0 [shape = 'u32[]', space=smem, size = 0x4, offset = 0x4, fixed_abs, tag = 'smem constant byte address 0x4 - core index']
  #allocation1 [shape = 'u32[144,128]{1,0:T(1,128)}', space=vmem, size = 0x12000, scoped, tag = 'internal scratch']
  %s0 = inlined_call_operand.hbm [shape: f32[2,4,256], index: 0, kind: input, shape index: {}]
  %s1 = inlined_call_operand.vmem [shape: f32[1,4], index: 1, kind: input, shape index: {}]
  %s2 = inlined_call_operand.hbm [shape: f32[2,4,256], index: 2, kind: output, shape index: {}]
  %s3 = sld [smem:[#allocation0]]
  $region45: #{tpu_custom_call.1} parent=0
    _
  %s5 = ssub.s32 1, %s3
  %s6 = scalar_select 0, %s5, %s3
  $region1: #{tpu_custom_call.1} parent=0
    #allocation2 [shape = 'u8[8192]{0}', space=vmem, size = 0x2000, scoped, tag = 'input window, operand 0']
    #allocation3 [shape = 's32[2]{0}', space=sflag, size = 0x8, scoped, tag = 'scoped memory for tpu_custom_call.1']
    #allocation4 [shape = 's32[2]{0}', space=sflag, size = 0x8, scoped, tag = 'scoped memory for tpu_custom_call.1']
    #allocation5 [shape = 'u8[8192]{0}', space=vmem, size = 0x2000, scoped, tag = 'output window, operand 0']
    %7 = vsyncpa [#allocation3], 0
    %s8 = scalar_lea.sflag [#allocation3], 1
    %9 = vsyncpa %s8, 0
    %10 = vsyncpa [#allocation4], 0
    %s11 = scalar_lea.sflag [#allocation4], 1
    %12 = vsyncpa %s11, 0
    loop: start=0, step=1, limit=4
    $region2: #{tpu_custom_call.1} parent=1 // loop_pre_header
      _
    $region3: #{tpu_custom_call.1} parent=1 // loop_header
      %s14 = sphi 0, %s18
      %p15 = scmp.ge.s32.totalorder %s14, 4
      %s24 = sphi 0, %s26
      %s27 = sphi 0, %s24
      %s28 = sphi 0, %s27
      %s44 = sphi 0, %s28
      %s48 = sphi 0, %s48
      %s50 = sphi 0, %s48
      %s51 = sphi 0, %s50
      %s65 = sphi 0, %s51
      %s71 = sphi 0, %s73
      %s74 = sphi 0, %s71
      %s75 = sphi 0, %s74
      %s91 = sphi 0, %s75
    $region4: #{tpu_custom_call.1} parent=1 // loop_header_branch
      %17 = sbr.rel (%p15) target = $region8
    $region5: #{tpu_custom_call.1} parent=1 // loop_body
      %s19 = ssub.s32 %s14, 1
      %s20 = ssub.s32 %s14, 2
      %s21 = sadd.s32 %s14, 1
      %s22 = ssub.s32 %s14, %s21
      %p23 = scmp.eq.s32.totalorder %s22, 0
      %s25 = sadd.s32 %s24, 1
      %s26 = scalar_select %p23, %s24, %s25
      %p29 = pneg %p23
      %p30 = scmp.eq.s32.totalorder %s14, 1
      %p31 = por %p29, %p30
      %p32 = scmp.ne.s32.totalorder %s24, %s27
      %p33 = scmp.eq.s32.totalorder %s14, 0
      %p34 = por %p32, %p33
      %p35 = scmp.ne.s32.totalorder %s24, %s27
      %p36 = scmp.eq.s32.totalorder %s19, 1
      %p37 = por %p35, %p36
      %p38 = scmp.ne.s32.totalorder %s27, %s28
      %p39 = scmp.eq.s32.totalorder %s19, 0
      %p40 = por %p38, %p39
      %p41 = scmp.ne.s32.totalorder %s27, %s28
      %p42 = scmp.eq.s32.totalorder %s20, 1
      %p43 = por %p41, %p42
      %p45 = scmp.ne.s32.totalorder %s28, %s44
      %p46 = scmp.eq.s32.totalorder %s20, 0
      %p47 = por %p45, %p46
      %s49 = sadd.s32 %s48, 1
      %p52 = scmp.eq.s32.totalorder %s14, 1
      %p53 = scmp.ne.s32.totalorder %s48, %s50
      %p54 = scmp.eq.s32.totalorder %s14, 0
      %p55 = por %p53, %p54
      %p56 = scmp.ne.s32.totalorder %s48, %s50
      %p57 = scmp.eq.s32.totalorder %s19, 1
      %p58 = por %p56, %p57
      %p59 = scmp.ne.s32.totalorder %s50, %s51
      %p60 = scmp.eq.s32.totalorder %s19, 0
      %p61 = por %p59, %p60
      %p62 = scmp.ne.s32.totalorder %s50, %s51
      %p63 = scmp.eq.s32.totalorder %s20, 1
      %p64 = por %p62, %p63
      %p66 = scmp.ne.s32.totalorder %s51, %s65
      %p67 = scmp.eq.s32.totalorder %s20, 0
      %p68 = por %p66, %p67
      %s69 = ssub.s32 %s14, %s21
      %p70 = scmp.eq.s32.totalorder %s69, 0
      %s72 = sadd.s32 %s71, 1
      %s73 = scalar_select %p70, %s71, %s72
      %p76 = pneg %p70
      %p77 = scmp.eq.s32.totalorder %s14, 1
      %p78 = por %p76, %p77
      %p79 = scmp.ne.s32.totalorder %s71, %s74
      %p80 = scmp.eq.s32.totalorder %s14, 0
      %p81 = por %p79, %p80
      %p82 = scmp.ne.s32.totalorder %s71, %s74
      %p83 = scmp.eq.s32.totalorder %s19, 1
      %p84 = por %p82, %p83
      %p85 = scmp.ne.s32.totalorder %s74, %s75
      %p86 = scmp.eq.s32.totalorder %s19, 0
      %p87 = por %p85, %p86
      %p88 = scmp.ne.s32.totalorder %s74, %s75
      %p89 = scmp.eq.s32.totalorder %s20, 1
      %p90 = por %p88, %p89
      %p92 = scmp.ne.s32.totalorder %s75, %s91
      %p93 = scmp.eq.s32.totalorder %s20, 0
      %p94 = por %p92, %p93
      %p95 = scmp.le.s32.totalorder 1, %s14
      %p96 = scmp.lt.s32.totalorder %s14, 3
      %p97 = pnand %p95, %p96
      %p98 = pneg %p97
      // Predicated region
      $region9: #{tpu_custom_call.1} parent=5 // pred_check
        _
      $region10: #{tpu_custom_call.1} parent=5 // pred_check_branch
        %100 = sbr.rel (%p97) target = $region12
      $region11: #{tpu_custom_call.1} parent=5 // pred_region
        %s101 = ssub.s32 %s14, 1
        // Predicated region
        $region13: #{tpu_custom_call.1} parent=11 // pred_check
          %p102 = pneg %p61
        $region14: #{tpu_custom_call.1} parent=11 // pred_check_branch
          %104 = sbr.rel (%p102) target = $region16
        $region15: #{tpu_custom_call.1} parent=11 // pred_region
          _
        $region16: #{tpu_custom_call.1} parent=11 // pred_fallthru
          _
      $region12: #{tpu_custom_call.1} parent=5 // pred_fallthru
        _
      %p105 = scmp.lt.s32.totalorder %s14, 2
      // Predicated region
      $region17: #{tpu_custom_call.1} parent=5 // pred_check
        %p106 = pneg %p105
      $region18: #{tpu_custom_call.1} parent=5 // pred_check_branch
        %108 = sbr.rel (%p106) target = $region20
      $region19: #{tpu_custom_call.1} parent=5 // pred_region
        // Predicated region
        $region21: #{tpu_custom_call.1} parent=19 // pred_check
          %p109 = pneg %p34
        $region22: #{tpu_custom_call.1} parent=19 // pred_check_branch
          %111 = sbr.rel (%p109) target = $region24
        $region23: #{tpu_custom_call.1} parent=19 // pred_region
          %s112 = sand.u32 %s24, 1
          %s113 = scalar_lea.sflag [#allocation3], %s112
          %s114 = sand.u32 %s24, 1
          %s115 = smul.addr %s114, 8
          %s116 = scalar_lea.vmem [#allocation2], %s115
          %s118 = ssub.s32 128, 128
          %119 = vsyncadd %s113, %s118
          %s120 = smul.addr %s14, 2
          %s121 = smul.addr %s120, 64
          %s122 = scalar_lea.hbm %s0, %s121
          %s124 = sshll.u32 %s116, 4
          %s125 = int_to_ptr.vmem [resolvable:$true] %s124
          %127 = dma.hbm_to_vmem [thread:$0]  %s122, 128, %s125, %s113
        $region24: #{tpu_custom_call.1} parent=19 // pred_fallthru
          _
      $region20: #{tpu_custom_call.1} parent=5 // pred_fallthru
        _
      %p128 = scmp.le.s32.totalorder 1, %s14
      %p129 = scmp.lt.s32.totalorder %s14, 3
      %p130 = pnand %p128, %p129
      %p131 = pneg %p130
      // Predicated region
      $region25: #{tpu_custom_call.1} parent=5 // pred_check
        _
      $region26: #{tpu_custom_call.1} parent=5 // pred_check_branch
        %133 = sbr.rel (%p130) target = $region28
      $region27: #{tpu_custom_call.1} parent=5 // pred_region
        %s134 = ssub.s32 %s14, 1
        %s135 = sand.u32 %s27, 1
        %s136 = scalar_lea.sflag [#allocation3], %s135
        %s137 = sand.u32 %s27, 1
        %s138 = smul.addr %s137, 8
        %s139 = scalar_lea.vmem [#allocation2], %s138
        // Predicated region
        $region29: #{tpu_custom_call.1} parent=27 // pred_check
          %p140 = pneg %p40
        $region30: #{tpu_custom_call.1} parent=27 // pred_check_branch
          %142 = sbr.rel (%p140) target = $region32
        $region31: #{tpu_custom_call.1} parent=27 // pred_region
          %143 = dma.done %s136, 128
        $region32: #{tpu_custom_call.1} parent=27 // pred_fallthru
          _
        %s144 = sand.u32 %s27, 1
        %s145 = scalar_lea.sflag [#allocation3], %s144
        %s146 = sand.u32 %s27, 1
        %s147 = smul.addr %s146, 8
        %s148 = scalar_lea.vmem [#allocation2], %s147
        %p149 = pneg %p40
        %p150 = pneg %p37
        %p151 = pneg %p61
        %p152 = pneg %p58
        %p153 = pneg %p87
        %p154 = pneg %p84
        %s155 = sand.u32 %s74, 1
        %s156 = scalar_lea.sflag [#allocation4], %s155
        %s157 = sand.u32 %s74, 1
        %s158 = smul.addr %s157, 8
        %s159 = scalar_lea.vmem [#allocation5], %s158
        %v160 = vld [vmem:[%s139] sm:$0xff]
        %v162 = vcombine.high %v160, %v160
        %vm164 = vcmask 1043456
        %v165 = vsel %vm164, %v160, 0.0
        %v166 = vsel %vm164, %v162, 0.0
        %v167 = vadd.f32 %v165, %v166
        %168 = vadd.xlane.f32.xlu0 %v167
        %v169 = vpop.xlane.xlu0 %168
        %v170 = vmul.f32 %v169, 0.00390625
        %v171 = vld [vmem:[%s1] sm:$0x1]
        %v173 = vlaneseq
        %v174 = vshrl.u32 %v173, 7
        %v175 = vsub.s32 0, %v174
        %v176 = vrot.slane %v171, %v175
        %178 = vbcast.lane.b32.xlu0 %v176, 256
        %v179 = vpop.permute.xlu0 %178
        %v181 = vmul.f32 %v170, %v179
        %183 = vset.pattern.permute.xlu0 0
        %184 = vperm.xlu0 %183, %v181
        %v185 = vpop.permute.xlu0 %184
        %v186 = vlaneseq
        %v187 = vand.u32 %v186, 127
        %v188 = vlaneseq
        %v189 = vshrl.u32 %v188, 7
        %v190 = vsub.s32 %v187, %v189
        %v191 = vrot.slane %v185, %v190
        %vm193 = vcmask 24576
        %v194 = vsel %vm193, %v191, 0.0
        %195 = vadd.xlane.f32.xlu0 %v194
        %v196 = vpop.xlane.xlu0 %195
        %v197 = vrot.slane %v196, 4
        %v198 = vadd.f32 %v196, %v197
        %v199 = vrot.slane %v198, 2
        %v200 = vadd.f32 %v198, %v199
        %v201 = vrot.slane %v200, 1
        %v202 = vadd.f32 %v200, %v201
        %s203 = vtos %v202
        %s204 = sxor.u32 %s203, 2147483648
        %v205 = vstv %s204
        %v206 = vmul.f32 %v205, 1.442695
        %v207 = vpow.pop %v206
        %s208 = vtos %v207
        %s209 = sadd.f32 %s208, 1.0
        %v210 = vstv %s209
        %v211 = vrcp.pop %v210
        %s212 = vtos %v211
        %v213 = vstv %s212
        %v214 = vmul.f32 %v160, %v213
        %215 = vst [vmem:[%s159] sm:$0xff] %v214
        %s216 = sand.u32 %s74, 1
        %s217 = scalar_lea.sflag [#allocation4], %s216
        %s218 = sand.u32 %s74, 1
        %s219 = smul.addr %s218, 8
        %s220 = scalar_lea.vmem [#allocation5], %s219
        // Predicated region
        $region33: #{tpu_custom_call.1} parent=27 // pred_check
          %p221 = pneg %p84
        $region34: #{tpu_custom_call.1} parent=27 // pred_check_branch
          %223 = sbr.rel (%p221) target = $region36
        $region35: #{tpu_custom_call.1} parent=27 // pred_region
          %s225 = ssub.s32 128, 128
          %226 = vsyncadd %s217, %s225
          %s227 = smul.addr %s19, 2
          %s228 = smul.addr %s227, 64
          %s229 = scalar_lea.hbm %s2, %s228
          %s231 = sshll.u32 %s220, 4
          %s232 = int_to_ptr.vmem [resolvable:$true] %s231
          %234 = dma.vmem_to_hbm [thread:$0]  %s232, 128, %s229, %s217
        $region36: #{tpu_custom_call.1} parent=27 // pred_fallthru
          _
      $region28: #{tpu_custom_call.1} parent=5 // pred_fallthru
        _
      %p235 = scmp.le.s32.totalorder 2, %s14
      // Predicated region
      $region37: #{tpu_custom_call.1} parent=5 // pred_check
        %p236 = pneg %p235
      $region38: #{tpu_custom_call.1} parent=5 // pred_check_branch
        %238 = sbr.rel (%p236) target = $region40
      $region39: #{tpu_custom_call.1} parent=5 // pred_region
        %s239 = ssub.s32 %s14, 2
        // Predicated region
        $region41: #{tpu_custom_call.1} parent=39 // pred_check
          %p240 = pneg %p90
        $region42: #{tpu_custom_call.1} parent=39 // pred_check_branch
          %242 = sbr.rel (%p240) target = $region44
        $region43: #{tpu_custom_call.1} parent=39 // pred_region
          %s243 = sand.u32 %s75, 1
          %s244 = scalar_lea.sflag [#allocation4], %s243
          %s245 = sand.u32 %s75, 1
          %s246 = smul.addr %s245, 8
          %s247 = scalar_lea.vmem [#allocation5], %s246
          %248 = dma.done %s244, 128
        $region44: #{tpu_custom_call.1} parent=39 // pred_fallthru
          _
      $region40: #{tpu_custom_call.1} parent=5 // pred_fallthru
        _
    $region6: #{tpu_custom_call.1} parent=1 // loop_footer
      %s18 = sadd.s32 1, %s14
    $region7: #{tpu_custom_call.1} parent=1 // loop_footer_branch
      %13 = sbr.rel target = $region3
    $region8: #{tpu_custom_call.1} parent=1 // loop_exit
      _
    %249 = vsyncpa [#allocation3], 1
    %s250 = scalar_lea.sflag [#allocation3], 1
    %251 = vsyncpa %s250, 1
    %252 = vsyncpa [#allocation4], 1
    %s253 = scalar_lea.sflag [#allocation4], 1
    %254 = vsyncpa %s253, 1

</llo_original>
